<compile_context>
chip_gen: v6e
topology: v6e:2x2x1
jax: 0.10.0
libtpu: 0.0.40
codegen_flags: <defaults>
</compile_context>

<pallas_src>
import functools
import math

import numpy as np
import jax
import jax.numpy as jnp
from jax.experimental import pallas as pl
from jax.experimental.pallas import tpu as pltpu


def _round_up(v, m):
    return ((v + m - 1) // m) * m


def _vmem_limit_bytes():
    """Explicit scoped-VMEM budget: ~100 MiB on v5e/v6e, v7x-safe fallback otherwise."""
    try:
        cap = int(pltpu.get_tpu_info().vmem_capacity_bytes)
    except Exception:
        cap = 64 << 20                       # conservative (v7x-sized) fallback
    return min(100 << 20, int(cap * 0.85))


def _gnet_chunk_kernel(layer_ref, col_ref, x_ref, w_ref, b_ref, o_ref,
                       lhs_ref, act_ref, *, num_layers, leak, tn,
                       kmax_chunks, cin0_chunks):
    """One grid step == one tn-wide output-column chunk of one linear layer.

    layer_ref: SMEM (G,) i32   layer id of chunk g                [scalar prefetch]
    col_ref:   SMEM (G,) i32   output-column chunk index in layer [scalar prefetch]
    x_ref:   VMEM (b_tile, cin0_chunks*tn)  bf16  zero-padded flattened latent
    w_ref:   VMEM (kmax_chunks*tn, tn)      bf16  weight chunk (W.T, He-scaled, zero-padded K rows)
    b_ref:   VMEM (1, tn)                   f32   bias chunk (He-scaled)
    o_ref:   VMEM (nout_chunks, b_tile, tn) f32   final activation slab (resident along chunk axis)
    lhs_ref: VMEM (b_tile, kmax_chunks*tn)  bf16  stable copy of the current layer's input
    act_ref: VMEM (kmax_chunks, b_tile, tn) bf16  layer-to-layer activation carrier
    """
    g = pl.program_id(1)
    l = layer_ref[g]
    col = col_ref[g]

    # Start of a batch tile: load the latent into the carrier.  Columns beyond the
    # real latent stay exactly zero so the zero-padded K rows of every weight chunk
    # neutralise them (and no uninitialised bf16 garbage can reach the MXU).
    @pl.when(g == 0)
    def _():
        act_ref[...] = jnp.zeros_like(act_ref)
        for j in range(cin0_chunks):
            act_ref[j] = x_ref[:, j * tn:(j + 1) * tn]

    # First output chunk of a layer: snapshot the layer input.  Later chunks of the
    # same layer overwrite carrier columns that overlap this layer's input, so the
    # matmul LHS must come from this stable copy.
    @pl.when(col == 0)
    def _():
        for j in range(kmax_chunks):
            lhs_ref[:, j * tn:(j + 1) * tn] = act_ref[j]

    # bf16 x bf16 on the MXU with f32 accumulation; bias + leaky-ReLU stay in f32.
    y = jnp.dot(lhs_ref[...], w_ref[...],
                preferred_element_type=jnp.float32) + b_ref[...]
    if leak == 0.0:
        z = jnp.maximum(y, 0.0)
    else:
        z = jnp.where(y >= 0.0, y, leak * y)

    @pl.when(l < num_layers - 1)
    def _():
        act_ref[col] = z.astype(act_ref.dtype)     # carrier stays bf16

    @pl.when(l == num_layers - 1)
    def _():
        o_ref[col] = z                             # final slab in f32, no extra copy


def pack_gnet_params(layers, *, equalized=True, weight_dtype=jnp.bfloat16,
                     vmem_budget=None):
    """Pack the layer chain (torch layout w:(Cout,Cin), b:(Cout,)) into one ragged,
    column-chunked weight/bias buffer plus per-chunk SMEM metadata."""
    if vmem_budget is None:
        vmem_budget = _vmem_limit_bytes()

    cins = [int(w.shape[1]) for (w, _) in layers]
    couts = [int(w.shape[0]) for (w, _) in layers]
    for i in range(len(layers) - 1):
        assert cins[i + 1] == couts[i], "layer chain widths must match"

    # Output-column chunk width: lane-dense, and small enough that the
    # double-buffered (Kmax_pad, tn) bf16 weight chunk stays inside the VMEM budget.
    kmax_pad = _round_up(max(cins), 128)
    tn = min(512, _round_up(min(couts), 128))
    max_tn = max(128, ((int(vmem_budget * 0.4) // (4 * kmax_pad)) // 128) * 128)
    tn = max(128, min(tn, max_tn))
    kmax_pad = _round_up(kmax_pad, tn)             # carrier / snapshot walk tn-chunks
    kmax_chunks = kmax_pad // tn
    cin0_pad = _round_up(cins[0], tn)
    cin0_chunks = cin0_pad // tn

    n_chunks = [-(-c // tn) for c in couts]
    total_chunks = int(sum(n_chunks))
    nout_chunks = int(n_chunks[-1])

    w_flat = np.zeros((kmax_pad, total_chunks * tn), dtype=np.float32)
    b_flat = np.zeros((1, total_chunks * tn), dtype=np.float32)
    layer_of_chunk = np.zeros((total_chunks,), dtype=np.int32)
    col_of_chunk = np.zeros((total_chunks,), dtype=np.int32)

    base = 0
    for i, (w, b) in enumerate(layers):
        cout, cin = int(w.shape[0]), int(w.shape[1])
        c = math.sqrt(2.0 / cin) if equalized else 1.0
        w_np = np.asarray(w, dtype=np.float32)
        b_np = np.asarray(b, dtype=np.float32)
        w_flat[:cin, base * tn: base * tn + cout] = w_np.T * c     # fold He constant
        b_flat[0, base * tn: base * tn + cout] = b_np * c
        layer_of_chunk[base: base + n_chunks[i]] = i
        col_of_chunk[base: base + n_chunks[i]] = np.arange(n_chunks[i], dtype=np.int32)
        base += n_chunks[i]

    return dict(
        w_flat=jnp.asarray(w_flat).astype(weight_dtype),
        b_flat=jnp.asarray(b_flat),
        layer_of_chunk=jnp.asarray(layer_of_chunk),
        col_of_chunk=jnp.asarray(col_of_chunk),
        tn=tn, kmax_chunks=kmax_chunks, cin0_chunks=cin0_chunks,
        nout_chunks=nout_chunks, total_chunks=total_chunks,
        num_layers=len(layers), cin0=cins[0], cout_last=couts[-1],
        vmem_budget=int(vmem_budget),
    )


def gnet_fused_forward(x, packed, *, leak, max_b_tile=512):
    """Run the whole GNet layer chain in one pallas_call.

    x: (B, dimLatent) f32.  Returns (B, cout_last) f32.
    """
    B, cin = x.shape
    assert cin == packed["cin0"]
    tn = packed["tn"]
    kc, c0c = packed["kmax_chunks"], packed["cin0_chunks"]
    noc, G, L = packed["nout_chunks"], packed["total_chunks"], packed["num_layers"]
    budget = packed["vmem_budget"]

    # One batch tile should cover the whole batch whenever it fits VMEM, so the
    # (bandwidth-binding) weight stream is read from HBM exactly once.
    def vmem_use(bt):
        return (2 * bt * c0c * tn * 2          # x block, double buffered, bf16
                + 2 * kc * tn * tn * 2         # weight chunk, double buffered, bf16
                + 2 * tn * 4                   # bias chunk
                + 2 * noc * bt * tn * 4        # output slab, double buffered, f32
                + 2 * bt * kc * tn * 2)        # lhs + act scratch, bf16

    b_tile = min(_round_up(B, 16), _round_up(max_b_tile, 16))   # >=16 rows for bf16 LHS tiling
    while b_tile > 16 and vmem_use(b_tile) > 0.7 * budget:
        b_tile = _round_up(b_tile // 2, 16)
    b_pad = _round_up(B, b_tile)

    x_pad = jnp.zeros((b_pad, c0c * tn), jnp.bfloat16)
    x_pad = x_pad.at[:B, :cin].set(x.astype(jnp.bfloat16))

    kernel = functools.partial(
        _gnet_chunk_kernel, num_layers=L, leak=float(leak), tn=tn,
        kmax_chunks=kc, cin0_chunks=c0c)

    out = pl.pallas_call(
        kernel,
        grid_spec=pltpu.PrefetchScalarGridSpec(
            num_scalar_prefetch=2,
            grid=(b_pad // b_tile, G),
            in_specs=[
                # latent: resident across the whole chunk axis of a batch tile
                pl.BlockSpec((b_tile, c0c * tn), lambda b, g, lyr, col: (b, 0)),
                # weight chunk g: streamed once, double-buffered behind the matmul
                pl.BlockSpec((kc * tn, tn), lambda b, g, lyr, col: (0, g)),
                pl.BlockSpec((1, tn), lambda b, g, lyr, col: (0, g)),
            ],
            # final activation slab: block index constant along the chunk axis
            # -> VMEM-resident, written back to HBM once per batch tile
            out_specs=pl.BlockSpec((noc, b_tile, tn),
                                   lambda b, g, lyr, col: (0, b, 0)),
            scratch_shapes=[
                pltpu.VMEM((b_tile, kc * tn), jnp.bfloat16),   # layer-input snapshot
                pltpu.VMEM((kc, b_tile, tn), jnp.bfloat16),    # activation carrier
            ],
        ),
        out_shape=jax.ShapeDtypeStruct((noc, b_pad, tn), jnp.float32),
        compiler_params=pltpu.CompilerParams(
            # Batch stays "arbitrary": splitting it over v7x's two TensorCores would
            # re-stream the (bandwidth-binding) weights once per core.
            dimension_semantics=("arbitrary", "arbitrary"),
            vmem_limit_bytes=budget,
        ),
    )(packed["layer_of_chunk"], packed["col_of_chunk"],
      x_pad, packed["w_flat"], packed["b_flat"])

    out = jnp.transpose(out, (1, 0, 2)).reshape(b_pad, noc * tn)
    return out[:B, :packed["cout_last"]]


class GNetPallas:
    """JAX/Pallas re-implementation of GNet's forward pass (fused layer chain)."""

    def __init__(self, dimLatent, depthScale0, key, leakyReluLeak=0.0,
                 equalizedlR=True, initBiasToZero=True, weight_dtype=jnp.bfloat16):
        self.dimLatent = dimLatent
        self.depthScale0 = depthScale0
        self.leak = float(leakyReluLeak)
        self.equalized = equalizedlR
        self.weight_dtype = weight_dtype
        self.scalesDepth = [depthScale0]

        # formatLayer: EqualizedLinear(dimLatent, 16 * depthScale0)
        k, self._key = jax.random.split(key)
        self.format_w = jax.random.normal(
            k, (16 * depthScale0, dimLatent), jnp.float32)   # torch (Cout, Cin), N(0,1)
        if initBiasToZero:
            self.format_b = jnp.zeros((16 * depthScale0,), jnp.float32)
        else:
            k, self._key = jax.random.split(self._key)
            self.format_b = jax.random.normal(k, (16 * depthScale0,), jnp.float32)

        self.scale_layers = []     # list of layer groups, each group = [(w, b), ...]
        self._packed = None

    def addScale(self, depthNewScale):
        # EqualizedLinear(depthNewScale * 4, depthNewScale * 16)
        self.scalesDepth.append(depthNewScale)
        k, self._key = jax.random.split(self._key)
        w = jax.random.normal(
            k, (depthNewScale * 16, depthNewScale * 4), jnp.float32)
        b = jnp.zeros((depthNewScale * 16,), jnp.float32)
        self.scale_layers.append([(w, b)])
        self._packed = None

    def _layers(self):
        layers = [(self.format_w, self.format_b)]
        for group in self.scale_layers:
            layers.extend(group)
        return layers

    def _prepare(self):
        if self._packed is None:
            self._packed = pack_gnet_params(
                self._layers(), equalized=self.equalized,
                weight_dtype=self.weight_dtype)
        return self._packed

    def __call__(self, x):
        B = x.shape[0]
        x = x.reshape(B, -1)                                # view(-1, num_flat_features)
        assert x.shape[1] == self.dimLatent, "flattened input must equal dimLatent"
        out = gnet_fused_forward(x, self._prepare(), leak=self.leak)
        d = len(self.scale_layers)
        side = 4 * 2 ** d
        return out.reshape(B, -1, side, side)               # NCHW, like PyTorch


def _reference_forward(net, x):
    """Pure-JAX f32 reference (no Pallas, no padding) for correctness checks."""
    B = x.shape[0]
    x = x.reshape(B, -1)

    def eq_lin(h, w, b):
        c = math.sqrt(2.0 / w.shape[1]) if net.equalized else 1.0
        y = (h @ w.T + b) * c
        return jnp.where(y >= 0.0, y, net.leak * y)

    x = eq_lin(x, net.format_w, net.format_b)
    for group in net.scale_layers:
        x = x.reshape(B, -1)
        for (w, b) in group:
            x = eq_lin(x, w, b)
    d = len(net.scale_layers)
    side = 4 * 2 ** d
    return x.reshape(B, -1, side, side)


if __name__ == "__main__":
    key = jax.random.PRNGKey(0)
    k_param, k_x = jax.random.split(key)

    dimLatent = 32
    depthScale0 = 4
    batch = 2

    # activation='LeakyReLU' with leak 0.0 (the PyTorch 'Linear' default never
    # defines self.leakyRelu, so LeakyReLU is the usable config).
    net = GNetPallas(dimLatent, depthScale0, k_param, leakyReluLeak=0.0,
                     equalizedlR=True, initBiasToZero=True)

    x = jax.random.normal(k_x, (batch, dimLatent), jnp.float32)

    # --- scale 0: output (B, depthScale0, 4, 4) ---
    out0 = jax.block_until_ready(net(x))
    assert out0.shape == (batch, depthScale0, 4, 4), out0.shape
    ref0 = _reference_forward(net, x)
    err0 = float(jnp.max(jnp.abs(out0 - ref0)))
    assert jnp.allclose(out0, ref0, atol=5e-2, rtol=5e-2), f"scale0 max err {err0}"

    # --- add one scale (depthNewScale*4 must equal 16*depthScale0) ---
    net.addScale(4 * depthScale0)
    out1 = jax.block_until_ready(net(x))
    assert out1.shape == (batch, (4 * depthScale0 * 16) // (8 * 8), 8, 8), out1.shape
    ref1 = _reference_forward(net, x)
    err1 = float(jnp.max(jnp.abs(out1 - ref1)))
    assert jnp.allclose(out1, ref1, atol=5e-2, rtol=5e-2), f"scale1 max err {err1}"

    print("KERNEL_OK")
</pallas_src>

<mosaic_0001>
module attributes {stable_mosaic.version = 11 : i64} {
  func.func @_gnet_chunk_kernel(%arg0: i32, %arg1: i32, %arg2: memref<1xi32, #tpu.memory_space<smem>>, %arg3: memref<1xi32, #tpu.memory_space<smem>>, %arg4: memref<16x128xbf16, #tpu.memory_space<vmem>>, %arg5: memref<128x128xbf16, #tpu.memory_space<vmem>>, %arg6: memref<1x128xf32, #tpu.memory_space<vmem>>, %arg7: memref<1x16x128xf32, #tpu.memory_space<vmem>>, %arg8: memref<16x128xbf16, #tpu.memory_space<vmem>>, %arg9: memref<1x16x128xbf16, #tpu.memory_space<vmem>>) attributes {dimension_semantics = [#tpu.dimension_semantics<arbitrary>, #tpu.dimension_semantics<arbitrary>], iteration_bounds = array<i64: 1, 1>, scalar_prefetch = 2 : i64, scratch_operands = 2 : i64, tpu.core_type = #tpu.core_type<tc>, window_params = [{transform_indices = @transform_0, window_bounds = array<i64: 16, 128>}, {transform_indices = @transform_1, window_bounds = array<i64: 128, 128>}, {transform_indices = @transform_2, window_bounds = array<i64: 1, 128>}, {transform_indices = @transform_3, window_bounds = array<i64: 1, 16, 128>}]} {
    %0 = arith.index_cast %arg1 : i32 to index
    %1 = memref.load %arg2[%0] : memref<1xi32, #tpu.memory_space<smem>>
    %2 = arith.index_cast %arg1 : i32 to index
    %3 = memref.load %arg3[%2] : memref<1xi32, #tpu.memory_space<smem>>
    %c0_i32 = arith.constant 0 : i32
    %4 = arith.cmpi eq, %arg1, %c0_i32 : i32
    %5 = arith.extui %4 : i1 to i32
    %c0_i32_0 = arith.constant 0 : i32
    %6 = arith.cmpi ne, %5, %c0_i32_0 : i32
    scf.if %6 {
      %cst_13 = arith.constant 0.000000e+00 : bf16
      %24 = vector.broadcast %cst_13 : bf16 to vector<1x16x128xbf16>
      %c0_14 = arith.constant 0 : index
      %c0_15 = arith.constant 0 : index
      %c0_16 = arith.constant 0 : index
      %25 = vector.load %arg9[%c0_14, %c0_15, %c0_16] : memref<1x16x128xbf16, #tpu.memory_space<vmem>>, vector<1x16x128xbf16>
      tpu.vector_store %arg9[%c0_14, %c0_15, %c0_16], %24 {strides = array<i32>} : memref<1x16x128xbf16, #tpu.memory_space<vmem>>, vector<1x16x128xbf16>,
      %c0_17 = arith.constant 0 : index
      %c0_18 = arith.constant 0 : index
      %26 = vector.load %arg4[%c0_17, %c0_18] : memref<16x128xbf16, #tpu.memory_space<vmem>>, vector<16x128xbf16>
      %c0_19 = arith.constant 0 : index
      %c0_20 = arith.constant 0 : index
      %c0_21 = arith.constant 0 : index
      %27 = vector.load %arg9[%c0_19, %c0_20, %c0_21] : memref<1x16x128xbf16, #tpu.memory_space<vmem>>, vector<1x16x128xbf16>
      %28 = vector.shape_cast %27 : vector<1x16x128xbf16> to vector<16x128xbf16>
      %29 = vector.shape_cast %26 : vector<16x128xbf16> to vector<1x16x128xbf16>
      tpu.vector_store %arg9[%c0_19, %c0_20, %c0_21], %29 {strides = array<i32>} : memref<1x16x128xbf16, #tpu.memory_space<vmem>>, vector<1x16x128xbf16>,
    } else {
    }
    %c0_i32_1 = arith.constant 0 : i32
    %7 = arith.cmpi eq, %3, %c0_i32_1 : i32
    %8 = arith.extui %7 : i1 to i32
    %c0_i32_2 = arith.constant 0 : i32
    %9 = arith.cmpi ne, %8, %c0_i32_2 : i32
    scf.if %9 {
      %c0_13 = arith.constant 0 : index
      %c0_14 = arith.constant 0 : index
      %c0_15 = arith.constant 0 : index
      %24 = vector.load %arg9[%c0_13, %c0_14, %c0_15] : memref<1x16x128xbf16, #tpu.memory_space<vmem>>, vector<1x16x128xbf16>
      %25 = vector.shape_cast %24 : vector<1x16x128xbf16> to vector<16x128xbf16>
      %c0_16 = arith.constant 0 : index
      %c0_17 = arith.constant 0 : index
      %26 = vector.load %arg8[%c0_16, %c0_17] : memref<16x128xbf16, #tpu.memory_space<vmem>>, vector<16x128xbf16>
      tpu.vector_store %arg8[%c0_16, %c0_17], %25 {strides = array<i32>} : memref<16x128xbf16, #tpu.memory_space<vmem>>, vector<16x128xbf16>,
    } else {
    }
    %c0 = arith.constant 0 : index
    %c0_3 = arith.constant 0 : index
    %10 = vector.load %arg8[%c0, %c0_3] : memref<16x128xbf16, #tpu.memory_space<vmem>>, vector<16x128xbf16>
    %c0_4 = arith.constant 0 : index
    %c0_5 = arith.constant 0 : index
    %11 = vector.load %arg5[%c0_4, %c0_5] : memref<128x128xbf16, #tpu.memory_space<vmem>>, vector<128x128xbf16>
    %cst = arith.constant dense<0.000000e+00> : vector<16x128xf32>
    %12 = tpu.matmul %10, %11, %cst {dimension_numbers = #tpu.dot_dimension_numbers<[1], [0], [0], [1], [0, 0, 1, 1], [], []>} : vector<16x128xbf16>, vector<128x128xbf16>, vector<16x128xf32> -> vector<16x128xf32>
    %c0_6 = arith.constant 0 : index
    %c0_7 = arith.constant 0 : index
    %13 = vector.load %arg6[%c0_6, %c0_7] : memref<1x128xf32, #tpu.memory_space<vmem>>, vector<1x128xf32>
    %14 = vector.broadcast %13 : vector<1x128xf32> to vector<16x128xf32>
    %15 = arith.addf %12, %14 : vector<16x128xf32>
    %cst_8 = arith.constant 0.000000e+00 : f32
    %16 = vector.broadcast %cst_8 : f32 to vector<16x128xf32>
    %17 = arith.maximumf %15, %16 : vector<16x128xf32>
    %c0_i32_9 = arith.constant 0 : i32
    %18 = arith.cmpi slt, %1, %c0_i32_9 : i32
    %19 = arith.extui %18 : i1 to i32
    %c0_i32_10 = arith.constant 0 : i32
    %20 = arith.cmpi ne, %19, %c0_i32_10 : i32
    scf.if %20 {
      %24 = arith.truncf %17 : vector<16x128xf32> to vector<16x128xbf16>
      %25 = arith.index_cast %3 : i32 to index
      %c0_13 = arith.constant 0 : index
      %c0_14 = arith.constant 0 : index
      %26 = vector.load %arg9[%25, %c0_13, %c0_14] : memref<1x16x128xbf16, #tpu.memory_space<vmem>>, vector<1x16x128xbf16>
      %27 = vector.shape_cast %26 : vector<1x16x128xbf16> to vector<16x128xbf16>
      %28 = vector.shape_cast %24 : vector<16x128xbf16> to vector<1x16x128xbf16>
      tpu.vector_store %arg9[%25, %c0_13, %c0_14], %28 {strides = array<i32>} : memref<1x16x128xbf16, #tpu.memory_space<vmem>>, vector<1x16x128xbf16>,
    } else {
    }
    %c0_i32_11 = arith.constant 0 : i32
    %21 = arith.cmpi eq, %1, %c0_i32_11 : i32
    %22 = arith.extui %21 : i1 to i32
    %c0_i32_12 = arith.constant 0 : i32
    %23 = arith.cmpi ne, %22, %c0_i32_12 : i32
    scf.if %23 {
      %24 = arith.index_cast %3 : i32 to index
      %c0_13 = arith.constant 0 : index
      %c0_14 = arith.constant 0 : index
      %25 = vector.load %arg7[%24, %c0_13, %c0_14] : memref<1x16x128xf32, #tpu.memory_space<vmem>>, vector<1x16x128xf32>
      %26 = vector.shape_cast %25 : vector<1x16x128xf32> to vector<16x128xf32>
      %27 = vector.shape_cast %17 : vector<16x128xf32> to vector<1x16x128xf32>
      tpu.vector_store %arg7[%24, %c0_13, %c0_14], %27 {strides = array<i32>} : memref<1x16x128xf32, #tpu.memory_space<vmem>>, vector<1x16x128xf32>,
    } else {
    }
    return
  }
  func.func @transform_0(%arg0: i32, %arg1: i32, %arg2: memref<1xi32, #tpu.memory_space<smem>>, %arg3: memref<1xi32, #tpu.memory_space<smem>>) -> (i32, i32) {
    %c0_i32 = arith.constant 0 : i32
    %c0_i32_0 = arith.constant 0 : i32
    return %arg0, %c0_i32 : i32, i32
  }
  func.func @transform_1(%arg0: i32, %arg1: i32, %arg2: memref<1xi32, #tpu.memory_space<smem>>, %arg3: memref<1xi32, #tpu.memory_space<smem>>) -> (i32, i32) {
    %c0_i32 = arith.constant 0 : i32
    %c0_i32_0 = arith.constant 0 : i32
    return %c0_i32, %arg1 : i32, i32
  }
  func.func @transform_2(%arg0: i32, %arg1: i32, %arg2: memref<1xi32, #tpu.memory_space<smem>>, %arg3: memref<1xi32, #tpu.memory_space<smem>>) -> (i32, i32) {
    %c0_i32 = arith.constant 0 : i32
    %c0_i32_0 = arith.constant 0 : i32
    return %c0_i32, %arg1 : i32, i32
  }
  func.func @transform_3(%arg0: i32, %arg1: i32, %arg2: memref<1xi32, #tpu.memory_space<smem>>, %arg3: memref<1xi32, #tpu.memory_space<smem>>) -> (i32, i32, i32) {
    %c0_i32 = arith.constant 0 : i32
    %c0_i32_0 = arith.constant 0 : i32
    %c0_i32_1 = arith.constant 0 : i32
    return %c0_i32, %arg0, %c0_i32_0 : i32, i32, i32
  }
}

</mosaic_0001>

<llo_original>
// kernel: tpu_custom_call.1
$region0: #{tpu_custom_call.1}
  #allocation0 [shape = 'u32[]', space=smem, size = 0x4, offset = 0x4, fixed_abs, tag = 'smem constant byte address 0x4 - core index']
  #allocation1 [shape = 'u32[144,128]{1,0:T(1,128)}', space=vmem, size = 0x12000, scoped, tag = 'internal scratch']
  #allocation2 [shape = 'bf16[16,128]{1,0:T(8,128)(2,1)}', space=vmem, size = 0x1000, scoped, tag = 'scratch operand']
  #allocation3 [shape = 'bf16[1,16,128]{2,1,0:T(8,128)(2,1)}', space=vmem, size = 0x1000, scoped, tag = 'scratch operand']
  #allocation4 [shape = 's32[1]{0}', space=sflag, size = 0x4, scoped, tag = 'scoped memory for tpu_custom_call.1']
  #allocation5 [shape = 's32[1]{0:T(128)S(6)}', space=smem, size = 0x200, scoped, tag = 'prefetched SMEM operand 0']
  #allocation6 [shape = 's32[1]{0:T(128)S(6)}', space=smem, size = 0x200, scoped, tag = 'prefetched SMEM operand 1']
  %s0 = inlined_call_operand.<no memory space> [shape: s32[1], index: 0, kind: input, shape index: {}]
  %s1 = inlined_call_operand.<no memory space> [shape: s32[1], index: 1, kind: input, shape index: {}]
  %s2 = inlined_call_operand.hbm [shape: bf16[16,128], index: 2, kind: input, shape index: {}]
  %s3 = inlined_call_operand.hbm [shape: bf16[128,128], index: 3, kind: input, shape index: {}]
  %s4 = inlined_call_operand.vmem [shape: f32[1,128], index: 4, kind: input, shape index: {}]
  %s5 = inlined_call_operand.hbm [shape: f32[1,16,128], index: 5, kind: output, shape index: {}]
  %s6 = sld [smem:[#allocation0]]
  $region46: #{tpu_custom_call.1} parent=0
    _
  %s8 = ssub.s32 1, %s6
  %s9 = scalar_select 0, %s8, %s6
  %10 = sst [smem:[#allocation5]] %s0
  %11 = sst [smem:[#allocation6]] %s1
  $region1: #{tpu_custom_call.1} parent=0
    #allocation7 [shape = 'u8[4096]{0}', space=vmem, size = 0x1000, scoped, tag = 'input window, operand 2, single buffered']
    #allocation8 [shape = 's32[1]{0}', space=sflag, size = 0x4, scoped, tag = 'scoped memory for tpu_custom_call.1']
    #allocation9 [shape = 's32[1]{0}', space=sflag, size = 0x4, scoped, tag = 'scoped memory for tpu_custom_call.1']
    #allocation10 [shape = 'u8[32768]{0}', space=vmem, size = 0x8000, scoped, tag = 'input window, operand 3, single buffered']
    #allocation11 [shape = 's32[1]{0}', space=sflag, size = 0x4, scoped, tag = 'scoped memory for tpu_custom_call.1']
    #allocation12 [shape = 'u8[8192]{0}', space=vmem, size = 0x2000, scoped, tag = 'output window, operand 0, single buffered']
    %12 = vsyncpa [#allocation8], 0
    %13 = vsyncpa [#allocation11], 0
    %14 = vsyncpa [#allocation9], 0
    // Predicated region
    $region2: #{tpu_custom_call.1} parent=1 // pred_check
      _
    $region3: #{tpu_custom_call.1} parent=1 // pred_check_branch
      %16 = sbr.rel (0) target = $region5
    $region4: #{tpu_custom_call.1} parent=1 // pred_region
      %s18 = ssub.s32 128, 128
      %19 = vsyncadd [#allocation8], %s18
      %s20 = sshll.u32 [#allocation7], 4
      %s21 = int_to_ptr.vmem [resolvable:$true] %s20
      %26 = dma.hbm_to_vmem [thread:$0]  %s2, 128, %s21, [#allocation8], 64, 64, 4
    $region5: #{tpu_custom_call.1} parent=1 // pred_fallthru
      _
    // Predicated region
    $region6: #{tpu_custom_call.1} parent=1 // pred_check
      _
    $region7: #{tpu_custom_call.1} parent=1 // pred_check_branch
      %28 = sbr.rel (0) target = $region9
    $region8: #{tpu_custom_call.1} parent=1 // pred_region
      %s30 = ssub.s32 1024, 1024
      %31 = vsyncadd [#allocation11], %s30
      %s32 = sshll.u32 [#allocation10], 4
      %s33 = int_to_ptr.vmem [resolvable:$true] %s32
      %38 = dma.hbm_to_vmem [thread:$0]  %s3, 1024, %s33, [#allocation11], 64, 64, 4
    $region9: #{tpu_custom_call.1} parent=1 // pred_fallthru
      _
    // Predicated region
    $region10: #{tpu_custom_call.1} parent=1 // pred_check
      _
    $region11: #{tpu_custom_call.1} parent=1 // pred_check_branch
      %40 = sbr.rel (0) target = $region13
    $region12: #{tpu_custom_call.1} parent=1 // pred_region
      _
    $region13: #{tpu_custom_call.1} parent=1 // pred_fallthru
      _
    // Predicated region
    $region14: #{tpu_custom_call.1} parent=1 // pred_check
      _
    $region15: #{tpu_custom_call.1} parent=1 // pred_check_branch
      %42 = sbr.rel (0) target = $region17
    $region16: #{tpu_custom_call.1} parent=1 // pred_region
      %43 = dma.done [#allocation8], 128
    $region17: #{tpu_custom_call.1} parent=1 // pred_fallthru
      _
    // Predicated region
    $region18: #{tpu_custom_call.1} parent=1 // pred_check
      _
    $region19: #{tpu_custom_call.1} parent=1 // pred_check_branch
      %45 = sbr.rel (0) target = $region21
    $region20: #{tpu_custom_call.1} parent=1 // pred_region
      %46 = dma.done [#allocation11], 1024
    $region21: #{tpu_custom_call.1} parent=1 // pred_fallthru
      _
    %s48 = sld [smem:[#allocation5]]
    %s49 = sld [smem:[#allocation6]]
    %p50 = scmp.eq.s32.totalorder 0, 0
    // Predicated region
    $region22: #{tpu_custom_call.1} parent=1 // pred_check
      %p51 = pneg %p50
    $region23: #{tpu_custom_call.1} parent=1 // pred_check_branch
      %53 = sbr.rel (%p51) target = $region25
    $region24: #{tpu_custom_call.1} parent=1 // pred_region
      %54 = vst [vmem:[#allocation3] sm:$0xf] 0
      %55 = vst [vmem:[#allocation3 + $0x4] sm:$0xf] 0
      %v56 = vld [vmem:[#allocation7] sm:$0xf]
      %v57 = vld [vmem:[#allocation7 + $0x4] sm:$0xf]
      %58 = vst [vmem:[#allocation3] sm:$0xf] %v56
      %59 = vst [vmem:[#allocation3 + $0x4] sm:$0xf] %v57
    $region25: #{tpu_custom_call.1} parent=1 // pred_fallthru
      _
    %p60 = scmp.eq.s32.totalorder %s49, 0
    // Predicated region
    $region26: #{tpu_custom_call.1} parent=1 // pred_check
      %p61 = pneg %p60
    $region27: #{tpu_custom_call.1} parent=1 // pred_check_branch
      %63 = sbr.rel (%p61) target = $region29
    $region28: #{tpu_custom_call.1} parent=1 // pred_region
      %v64 = vld [vmem:[#allocation3] sm:$0xf]
      %v65 = vld [vmem:[#allocation3 + $0x4] sm:$0xf]
      %66 = vst [vmem:[#allocation2] sm:$0xf] %v64
      %67 = vst [vmem:[#allocation2 + $0x4] sm:$0xf] %v65
    $region29: #{tpu_custom_call.1} parent=1 // pred_fallthru
      _
    %v68 = vld [vmem:[#allocation2] sm:$0xf]
    %v69 = vld [vmem:[#allocation2 + $0x4] sm:$0xf]
    %v70 = vld [vmem:[#allocation10] sm:$0xf]
    %v71 = vld [vmem:[#allocation10 + $0x4] sm:$0xf]
    %v72 = vld [vmem:[#allocation10 + $0x8] sm:$0xf]
    %v73 = vld [vmem:[#allocation10 + $0xc] sm:$0xf]
    %v74 = vld [vmem:[#allocation10 + $0x10] sm:$0xf]
    %v75 = vld [vmem:[#allocation10 + $0x14] sm:$0xf]
    %v76 = vld [vmem:[#allocation10 + $0x18] sm:$0xf]
    %v77 = vld [vmem:[#allocation10 + $0x1c] sm:$0xf]
    %v78 = vld [vmem:[#allocation10 + $0x20] sm:$0xf]
    %v79 = vld [vmem:[#allocation10 + $0x24] sm:$0xf]
    %v80 = vld [vmem:[#allocation10 + $0x28] sm:$0xf]
    %v81 = vld [vmem:[#allocation10 + $0x2c] sm:$0xf]
    %v82 = vld [vmem:[#allocation10 + $0x30] sm:$0xf]
    %v83 = vld [vmem:[#allocation10 + $0x34] sm:$0xf]
    %v84 = vld [vmem:[#allocation10 + $0x38] sm:$0xf]
    %v85 = vld [vmem:[#allocation10 + $0x3c] sm:$0xf]
    %v86 = vld [vmem:[%s4] sm:$0x1]
    %v88 = vlaneseq
    %v89 = vshrl.u32 %v88, 7
    %v90 = vsub.s32 0, %v89
    %v91 = vrot.slane %v86, %v90
    %v95 = vunpack.c.l.b16 %v68
    %v96 = vunpack.c.l.b16 %v69
    %v97 = vpack.c.b16 %v96, %v95
    %v115 = vunpack.c.l.b16 %v70
    %v116 = vunpack.c.l.b16 %v71
    %v117 = vunpack.c.l.b16 %v72
    %v118 = vunpack.c.l.b16 %v73
    %v119 = vunpack.c.l.b16 %v74
    %v120 = vunpack.c.l.b16 %v75
    %v121 = vunpack.c.l.b16 %v76
    %v122 = vunpack.c.l.b16 %v77
    %v123 = vunpack.c.l.b16 %v78
    %v124 = vunpack.c.l.b16 %v79
    %v125 = vunpack.c.l.b16 %v80
    %v126 = vunpack.c.l.b16 %v81
    %v127 = vunpack.c.l.b16 %v82
    %v128 = vunpack.c.l.b16 %v83
    %v129 = vunpack.c.l.b16 %v84
    %v130 = vunpack.c.l.b16 %v85
    %v131 = vpack.c.b16 %v116, %v115
    %v132 = vpack.c.b16 %v118, %v117
    %v133 = vpack.c.b16 %v120, %v119
    %v134 = vpack.c.b16 %v122, %v121
    %v135 = vpack.c.b16 %v124, %v123
    %v136 = vpack.c.b16 %v126, %v125
    %v137 = vpack.c.b16 %v128, %v127
    %v138 = vpack.c.b16 %v130, %v129
    %147 = vmatprep.subr.bf16.mxu0 0
    %148 = vmatpush1.bf16.msra.mxu0 %v138
    %149 = vmatprep.subr.bf16.mxu0 0
    %150 = vmatpush1.bf16.msra.mxu0 %v137
    %151 = vmatprep.subr.bf16.mxu0 0
    %152 = vmatpush1.bf16.msra.mxu0 %v136
    %153 = vmatprep.subr.bf16.mxu0 0
    %154 = vmatpush1.bf16.msra.mxu0 %v135
    %155 = vmatprep.subr.bf16.mxu0 0
    %156 = vmatpush1.bf16.msra.mxu0 %v134
    %157 = vmatprep.subr.bf16.mxu0 0
    %158 = vmatpush1.bf16.msra.mxu0 %v133
    %159 = vmatprep.subr.bf16.mxu0 0
    %160 = vmatpush1.bf16.msra.mxu0 %v132
    %161 = vmatprep.subr.bf16.mxu0 0
    %162 = vmatpush1.bf16.msra.mxu0 %v131
    %163 = vmatprep.subr.bf16.mxu0 0
    %164 = vmatpush2.bf16.msra.mxu0 0
    %165 = vmatprep.subr.bf16.mxu0 0
    %166 = vmatpush2.bf16.msra.mxu0 0
    %167 = vmatprep.subr.bf16.mxu0 0
    %168 = vmatpush2.bf16.msra.mxu0 0
    %169 = vmatprep.subr.bf16.mxu0 0
    %170 = vmatpush2.bf16.msra.mxu0 0
    %171 = vmatprep.subr.bf16.mxu0 0
    %172 = vmatpush2.bf16.msra.mxu0 0
    %173 = vmatprep.subr.bf16.mxu0 0
    %174 = vmatpush2.bf16.msra.mxu0 0
    %175 = vmatprep.subr.bf16.mxu0 0
    %176 = vmatpush2.bf16.msra.mxu0 0
    %177 = vmatprep.subr.bf16.mxu0 0
    %178 = vmatpush2.bf16.msra.mxu0 0
    %179 = vmatprep.mubr.bf16.mxu0 0
    %180 = vmatmul.mubr.bf16.gmra.mxu0 %v97
    %v181 = vpop.f32.mrf.mxu0
    %v182 = vadd.f32 %v91, %v181
    %v183 = vpop.f32.mrf.mxu0
    %v184 = vpop.f32.mrf.mxu0
    %v185 = vadd.f32 %v91, %v184
    %v186 = vpop.f32.mrf.mxu0
    %187 = vdwg.mxu0
    %v188 = vmax.f32 %v182, 0.0
    %v189 = vmax.f32 %v185, 0.0
    %p190 = scmp.lt.s32.totalorder %s48, 0
    // Predicated region
    $region30: #{tpu_custom_call.1} parent=1 // pred_check
      %p191 = pneg %p190
    $region31: #{tpu_custom_call.1} parent=1 // pred_check_branch
      %193 = sbr.rel (%p191) target = $region33
    $region32: #{tpu_custom_call.1} parent=1 // pred_region
      %v194 = vpack.c.bf16 %v189, %v188
      %v196 = vunpack.c.l.b16 %v194
      %v197 = vunpack.c.h.b16 %v194
      %v198 = vpack.c.b16 %v196, %v196
      %v199 = vpack.c.b16 %v197, %v197
      %s202 = smul.u32 %s49, 2
      %s203 = smul.addr %s202, 4
      %s204 = scalar_lea.vmem [#allocation3], %s203
      %205 = vst [vmem:[%s204] sm:$0xf] %v198
      %206 = vst [vmem:[%s204 + $0x4] sm:$0xf] %v199
    $region33: #{tpu_custom_call.1} parent=1 // pred_fallthru
      _
    %p207 = scmp.eq.s32.totalorder %s48, 0
    // Predicated region
    $region34: #{tpu_custom_call.1} parent=1 // pred_check
      %p208 = pneg %p207
    $region35: #{tpu_custom_call.1} parent=1 // pred_check_branch
      %210 = sbr.rel (%p208) target = $region37
    $region36: #{tpu_custom_call.1} parent=1 // pred_region
      %s211 = smul.u32 %s49, 16
      %s212 = scalar_lea.vmem [#allocation12], %s211
      %213 = vst [vmem:[%s212] sm:$0xff] %v188
      %214 = vst [vmem:[%s212 + $0x8] sm:$0xff] %v189
    $region37: #{tpu_custom_call.1} parent=1 // pred_fallthru
      _
    // Predicated region
    $region38: #{tpu_custom_call.1} parent=1 // pred_check
      _
    $region39: #{tpu_custom_call.1} parent=1 // pred_check_branch
      %216 = sbr.rel (0) target = $region41
    $region40: #{tpu_custom_call.1} parent=1 // pred_region
      %s218 = ssub.s32 256, 256
      %219 = vsyncadd [#allocation9], %s218
      %s220 = sshll.u32 [#allocation12], 4
      %s221 = int_to_ptr.vmem [resolvable:$true] %s220
      %226 = dma.vmem_to_hbm [thread:$0]  %s221, 256, %s5, [#allocation9], 128, 128, 8
    $region41: #{tpu_custom_call.1} parent=1 // pred_fallthru
      _
    // Predicated region
    $region42: #{tpu_custom_call.1} parent=1 // pred_check
      _
    $region43: #{tpu_custom_call.1} parent=1 // pred_check_branch
      %228 = sbr.rel (0) target = $region45
    $region44: #{tpu_custom_call.1} parent=1 // pred_region
      %229 = dma.done [#allocation9], 256
    $region45: #{tpu_custom_call.1} parent=1 // pred_fallthru
      _
    %230 = vsyncpa [#allocation8], 1
    %231 = vsyncpa [#allocation11], 1
    %232 = vsyncpa [#allocation9], 1

</llo_original>
